<compile_context>
chip_gen: v6e
topology: v6e:2x2x1
jax: 0.10.0
libtpu: 0.0.40
codegen_flags: <defaults>
</compile_context>

<pallas_src>
import jax
import jax.numpy as jnp
from jax import lax
from jax.experimental import pallas as pl
from jax.experimental.pallas import tpu as pltpu


_SUB_TOKENS = 256        # token sub-tile for the in-kernel one-hot matmul
_VOCAB_CHUNK = 512       # vocab rows streamed through VMEM per grid step


def _round_up(x: int, m: int) -> int:
    return ((x + m - 1) // m) * m


def _make_embedding_kernel(n_vchunks: int, sub_tokens: int = _SUB_TOKENS):
    """One-hot MXU gather, vocab-chunked, with a resident (T, D) accumulator."""

    def _gather_chunk(idx_ref, emb_ref, write_tile):
        # idx_ref: (T, 1) int32 token ids for this token block
        # emb_ref: (VC, D) vocab chunk of the embedding table
        # write_tile(t0, ts, part): consume a (ts, D) f32 partial result
        T = idx_ref.shape[0]
        VC = emb_ref.shape[0]
        base = pl.program_id(1) * VC          # global row offset of this chunk
        emb = emb_ref[...]
        step = min(sub_tokens, T)
        for t0 in range(0, T, step):          # static, fully unrolled
            ts = min(step, T - t0)
            ids = idx_ref[t0:t0 + ts, :]                              # (ts, 1)
            cols = base + lax.broadcasted_iota(jnp.int32, (ts, VC), 1)
            one_hot = (ids == cols).astype(emb.dtype)                 # (ts, VC)
            part = jnp.dot(one_hot, emb, preferred_element_type=jnp.float32)
            write_tile(t0, ts, part)

    if n_vchunks == 1:
        # Whole (padded) vocab fits one chunk: table stays VMEM-resident
        # (constant block index) and we write results straight to the output.
        def kernel(idx_ref, emb_ref, out_ref):
            def write(t0, ts, part):
                out_ref[t0:t0 + ts, :] = part.astype(out_ref.dtype)
            _gather_chunk(idx_ref, emb_ref, write)
    else:
        # Vocab streamed in chunks: accumulate into a resident f32 scratch,
        # zero on the first chunk, write out on the last.
        def kernel(idx_ref, emb_ref, out_ref, acc_ref):
            v = pl.program_id(1)

            @pl.when(v == 0)
            def _():
                acc_ref[...] = jnp.zeros_like(acc_ref)

            def write(t0, ts, part):
                acc_ref[t0:t0 + ts, :] += part
            _gather_chunk(idx_ref, emb_ref, write)

            @pl.when(v == n_vchunks - 1)
            def _():
                out_ref[...] = acc_ref[...].astype(out_ref.dtype)

    return kernel


def word_embeddings_forward(indices, emb_table, *,
                            block_tokens: int = 2048,
                            vocab_chunk: int = _VOCAB_CHUNK):
    """Equivalent of WordEmbeddings.forward: emb_table[indices].

    indices:   int32 [B, S]
    emb_table: float32 [V, D]
    returns:   float32 [B, S, D]
    """
    B, S = indices.shape
    V, D = emb_table.shape
    N = B * S

    # ---- lane-pad the embedding dim so output stores are full vregs --------
    D_pad = _round_up(D, 128)
    if D_pad != D:
        emb_table = jnp.pad(emb_table, ((0, 0), (0, D_pad - D)))

    # ---- token blocking: big blocks, but keep the grid >= 2 (v7x megacore) -
    T = max(8, min(int(block_tokens), _round_up(N, 8)))
    if N > 8 and pl.cdiv(N, T) < 2:
        T = _round_up(pl.cdiv(N, 2), 8)
    n_blocks = pl.cdiv(N, T)
    N_pad = n_blocks * T

    # ---- vocab chunking -----------------------------------------------------
    VC = min(int(vocab_chunk), _round_up(V, 8))   # multiple of 8
    V_pad = _round_up(V, VC)
    n_vchunks = V_pad // VC
    if V_pad != V:
        # Zero rows: never matched by any in-range id; keeps edge chunks clean.
        emb_table = jnp.pad(emb_table, ((0, V_pad - V), (0, 0)))

    idx = indices.reshape(N).astype(jnp.int32)
    if N_pad != N:
        idx = jnp.pad(idx, (0, N_pad - N))        # pad tokens -> row 0, sliced off
    idx = idx.reshape(N_pad, 1)

    kernel = _make_embedding_kernel(n_vchunks)
    scratch = [] if n_vchunks == 1 else [pltpu.VMEM((T, D_pad), jnp.float32)]

    elt = emb_table.dtype.itemsize
    # VMEM: 2x table chunk + 2x output block + 2x (lane-padded) idx block + acc.
    vmem_needed = (2 * VC * D_pad * elt
                   + 2 * T * D_pad * elt
                   + 2 * T * 128 * 4
                   + (0 if n_vchunks == 1 else T * D_pad * 4)
                   + (2 << 20))
    try:
        vmem_cap = pltpu.get_tpu_info().vmem_capacity_bytes
    except Exception:
        vmem_cap = 64 << 20   # be conservative: v7x per-TC capacity
    vmem_limit = int(min(vmem_cap - (8 << 20), max(32 << 20, 2 * vmem_needed)))

    table_bytes = V_pad * D_pad * elt
    cost = pl.CostEstimate(
        flops=2 * N_pad * V_pad * D_pad,
        transcendentals=0,
        bytes_accessed=(table_bytes * (n_blocks if n_vchunks > 1 else 1)
                        + N_pad * 4 + N_pad * D_pad * elt),
    )

    grid_spec = pltpu.PrefetchScalarGridSpec(
        num_scalar_prefetch=0,
        grid=(n_blocks, n_vchunks),              # vocab (reduction) innermost
        in_specs=[
            # Per-block token ids.
            pl.BlockSpec((T, 1), lambda i, v: (i, 0)),
            # Vocab chunk of the table; constant index when n_vchunks == 1
            # -> loaded once and kept resident across the whole grid.
            pl.BlockSpec((VC, D_pad), lambda i, v: (v, 0)),
        ],
        # Output block resident across the vocab axis (accumulator pattern).
        out_specs=pl.BlockSpec((T, D_pad), lambda i, v: (i, 0)),
        scratch_shapes=scratch,
    )

    out = pl.pallas_call(
        kernel,
        out_shape=jax.ShapeDtypeStruct((N_pad, D_pad), emb_table.dtype),
        grid_spec=grid_spec,
        compiler_params=pltpu.CompilerParams(
            dimension_semantics=("parallel", "arbitrary"),
            vmem_limit_bytes=vmem_limit,
        ),
        cost_estimate=cost,
    )(idx, emb_table)

    return out[:N, :D].reshape(B, S, D)


if __name__ == "__main__":
    # Deterministic synthetic parameters / inputs (no checkpoint loading).
    # torch.nn.Embedding(len(alphabet), emb_dim) initializes weights ~ N(0, 1).
    key = jax.random.PRNGKey(0)
    k_emb, k_idx, k_emb2, k_idx2 = jax.random.split(key, 4)

    # --- small-vocab path (single vocab chunk, VMEM-resident table) ---------
    vocab_size, emb_dim, batch, seq = 50, 128, 2, 8
    emb_table = jax.random.normal(k_emb, (vocab_size, emb_dim), dtype=jnp.float32)
    indices = jax.random.randint(k_idx, (batch, seq), 0, vocab_size, dtype=jnp.int32)

    out = jax.block_until_ready(word_embeddings_forward(indices, emb_table))
    ref = jnp.take(emb_table, indices, axis=0)
    assert out.shape == (batch, seq, emb_dim), out.shape
    assert jnp.allclose(out, ref), "Pallas embedding lookup mismatch (small vocab)"

    # --- mid-size vocab path (multiple vocab chunks, accumulator scratch) ---
    vocab2, seq2 = 700, 40
    emb_table2 = jax.random.normal(k_emb2, (vocab2, emb_dim), dtype=jnp.float32)
    indices2 = jax.random.randint(k_idx2, (batch, seq2), 0, vocab2, dtype=jnp.int32)

    out2 = jax.block_until_ready(word_embeddings_forward(indices2, emb_table2))
    ref2 = jnp.take(emb_table2, indices2, axis=0)
    assert out2.shape == (batch, seq2, emb_dim), out2.shape
    assert jnp.allclose(out2, ref2), "Pallas embedding lookup mismatch (chunked vocab)"

    print("KERNEL_OK")
</pallas_src>

<mosaic_0001>
module attributes {stable_mosaic.version = 11 : i64} {
  func.func @kernel(%arg0: i32, %arg1: i32, %arg2: memref<8x1xi32, #tpu.memory_space<vmem>>, %arg3: memref<56x128xf32, #tpu.memory_space<vmem>>, %arg4: memref<8x128xf32, #tpu.memory_space<vmem>>) attributes {dimension_semantics = [#tpu.dimension_semantics<parallel>, #tpu.dimension_semantics<arbitrary>], iteration_bounds = array<i64: 2, 1>, scalar_prefetch = 0 : i64, scratch_operands = 0 : i64, tpu.core_type = #tpu.core_type<tc>, window_params = [{transform_indices = @transform_0, window_bounds = array<i64: 8, 1>}, {transform_indices = @transform_1, window_bounds = array<i64: 56, 128>}, {transform_indices = @transform_2, window_bounds = array<i64: 8, 128>}]} {
    %c56_i32 = arith.constant 56 : i32
    %0 = arith.muli %arg1, %c56_i32 : i32
    %c0 = arith.constant 0 : index
    %c0_0 = arith.constant 0 : index
    %1 = vector.load %arg3[%c0, %c0_0] : memref<56x128xf32, #tpu.memory_space<vmem>>, vector<56x128xf32>
    %c0_1 = arith.constant 0 : index
    %c0_2 = arith.constant 0 : index
    %2 = vector.load %arg2[%c0_1, %c0_2] : memref<8x1xi32, #tpu.memory_space<vmem>>, vector<8x1xi32>
    %3 = tpu.iota {dimensions = array<i32: 1>} : vector<8x56xi32>
    %4 = vector.broadcast %0 : i32 to vector<8x56xi32>
    %5 = arith.addi %4, %3 : vector<8x56xi32>
    %6 = vector.broadcast %2 : vector<8x1xi32> to vector<8x56xi32>
    %7 = arith.cmpi eq, %6, %5 : vector<8x56xi32>
    %8 = arith.extui %7 : vector<8x56xi1> to vector<8x56xi32>
    %9 = arith.sitofp %8 : vector<8x56xi32> to vector<8x56xf32>
    %cst = arith.constant dense<0.000000e+00> : vector<8x128xf32>
    %10 = tpu.matmul %9, %1, %cst {dimension_numbers = #tpu.dot_dimension_numbers<[1], [0], [0], [1], [0, 0, 1, 1], [], []>} : vector<8x56xf32>, vector<56x128xf32>, vector<8x128xf32> -> vector<8x128xf32>
    %c0_3 = arith.constant 0 : index
    %c0_4 = arith.constant 0 : index
    %11 = vector.load %arg4[%c0_3, %c0_4] : memref<8x128xf32, #tpu.memory_space<vmem>>, vector<8x128xf32>
    tpu.vector_store %arg4[%c0_3, %c0_4], %10 {strides = array<i32>} : memref<8x128xf32, #tpu.memory_space<vmem>>, vector<8x128xf32>,
    return
  }
  func.func @transform_0(%arg0: i32, %arg1: i32) -> (i32, i32) {
    %c0_i32 = arith.constant 0 : i32
    %c0_i32_0 = arith.constant 0 : i32
    return %arg0, %c0_i32 : i32, i32
  }
  func.func @transform_1(%arg0: i32, %arg1: i32) -> (i32, i32) {
    %c0_i32 = arith.constant 0 : i32
    %c0_i32_0 = arith.constant 0 : i32
    return %arg1, %c0_i32 : i32, i32
  }
  func.func @transform_2(%arg0: i32, %arg1: i32) -> (i32, i32) {
    %c0_i32 = arith.constant 0 : i32
    %c0_i32_0 = arith.constant 0 : i32
    return %arg0, %c0_i32 : i32, i32
  }
}

</mosaic_0001>

<llo_original>
// kernel: tpu_custom_call.1
$region0: #{tpu_custom_call.1}
  #allocation0 [shape = 'u32[]', space=smem, size = 0x4, offset = 0x4, fixed_abs, tag = 'smem constant byte address 0x4 - core index']
  #allocation1 [shape = 'u32[144,128]{1,0:T(1,128)}', space=vmem, size = 0x12000, scoped, tag = 'internal scratch']
  %s0 = inlined_call_operand.vmem [shape: s32[16,1], index: 0, kind: input, shape index: {}]
  %s1 = inlined_call_operand.hbm [shape: f32[56,128], index: 1, kind: input, shape index: {}]
  %s2 = inlined_call_operand.hbm [shape: f32[16,128], index: 2, kind: output, shape index: {}]
  %s3 = sld [smem:[#allocation0]]
  $region45: #{tpu_custom_call.1} parent=0
    _
  %s5 = ssub.s32 1, %s3
  %s6 = scalar_select 0, %s5, %s3
  $region1: #{tpu_custom_call.1} parent=0
    #allocation2 [shape = 'u8[28672]{0}', space=vmem, size = 0x7000, scoped, tag = 'input window, operand 1, single buffered']
    #allocation3 [shape = 's32[2]{0}', space=sflag, size = 0x8, scoped, tag = 'scoped memory for tpu_custom_call.1']
    #allocation4 [shape = 's32[2]{0}', space=sflag, size = 0x8, scoped, tag = 'scoped memory for tpu_custom_call.1']
    #allocation5 [shape = 'u8[8192]{0}', space=vmem, size = 0x2000, scoped, tag = 'output window, operand 0']
    %7 = vsyncpa [#allocation3], 0
    %8 = vsyncpa [#allocation4], 0
    %s9 = scalar_lea.sflag [#allocation4], 1
    %10 = vsyncpa %s9, 0
    loop: start=0, step=1, limit=4
    $region2: #{tpu_custom_call.1} parent=1 // loop_pre_header
      _
    $region3: #{tpu_custom_call.1} parent=1 // loop_header
      %s12 = sphi 0, %s16
      %p13 = scmp.ge.s32.totalorder %s12, 4
      %s19 = sphi 0, %s31
      %s20 = sphi 0, %s27
      %s21 = sphi 0, %s19
      %s22 = sphi 0, %s20
      %s23 = sphi 0, %s21
      %s24 = sphi 0, %s22
      %s34 = sphi 0, %s36
      %s37 = sphi 0, %s34
      %s38 = sphi 0, %s37
      %s54 = sphi 0, %s38
      %s60 = sphi 0, %s62
      %s63 = sphi 0, %s60
      %s64 = sphi 0, %s63
      %s80 = sphi 0, %s64
      %s86 = sphi 0, %s88
      %s89 = sphi 0, %s86
      %s90 = sphi 0, %s89
      %s106 = sphi 0, %s90
    $region4: #{tpu_custom_call.1} parent=1 // loop_header_branch
      %15 = sbr.rel (%p13) target = $region8
    $region5: #{tpu_custom_call.1} parent=1 // loop_body
      %s17 = ssub.s32 %s12, 1
      %s18 = ssub.s32 %s12, 2
      %s25 = sadd.s32 1, %s20
      %p26 = scmp.ge.s32.totalorder %s25, 1
      %s27 = scalar_select %p26, 0, %s25
      %s28 = sadd.s32 1, %s19
      %s29 = scalar_select %p26, %s28, %s19
      %p30 = scmp.ge.s32.totalorder %s29, 2
      %s31 = scalar_select %p30, 0, %s29
      %s32 = ssub.s32 %s19, %s31
      %p33 = scmp.eq.s32.totalorder %s32, 0
      %s35 = sadd.s32 %s34, 1
      %s36 = scalar_select %p33, %s34, %s35
      %p39 = pneg %p33
      %p40 = scmp.eq.s32.totalorder %s12, 1
      %p41 = por %p39, %p40
      %p42 = scmp.ne.s32.totalorder %s34, %s37
      %p43 = scmp.eq.s32.totalorder %s12, 0
      %p44 = por %p42, %p43
      %p45 = scmp.ne.s32.totalorder %s34, %s37
      %p46 = scmp.eq.s32.totalorder %s17, 1
      %p47 = por %p45, %p46
      %p48 = scmp.ne.s32.totalorder %s37, %s38
      %p49 = scmp.eq.s32.totalorder %s17, 0
      %p50 = por %p48, %p49
      %p51 = scmp.ne.s32.totalorder %s37, %s38
      %p52 = scmp.eq.s32.totalorder %s18, 1
      %p53 = por %p51, %p52
      %p55 = scmp.ne.s32.totalorder %s38, %s54
      %p56 = scmp.eq.s32.totalorder %s18, 0
      %p57 = por %p55, %p56
      %s58 = ssub.s32 %s20, %s27
      %p59 = scmp.eq.s32.totalorder %s58, 0
      %s61 = sadd.s32 %s60, 1
      %s62 = scalar_select %p59, %s60, %s61
      %p65 = pneg %p59
      %p66 = scmp.eq.s32.totalorder %s12, 1
      %p67 = por %p65, %p66
      %p68 = scmp.ne.s32.totalorder %s60, %s63
      %p69 = scmp.eq.s32.totalorder %s12, 0
      %p70 = por %p68, %p69
      %p71 = scmp.ne.s32.totalorder %s60, %s63
      %p72 = scmp.eq.s32.totalorder %s17, 1
      %p73 = por %p71, %p72
      %p74 = scmp.ne.s32.totalorder %s63, %s64
      %p75 = scmp.eq.s32.totalorder %s17, 0
      %p76 = por %p74, %p75
      %p77 = scmp.ne.s32.totalorder %s63, %s64
      %p78 = scmp.eq.s32.totalorder %s18, 1
      %p79 = por %p77, %p78
      %p81 = scmp.ne.s32.totalorder %s64, %s80
      %p82 = scmp.eq.s32.totalorder %s18, 0
      %p83 = por %p81, %p82
      %s84 = ssub.s32 %s19, %s31
      %p85 = scmp.eq.s32.totalorder %s84, 0
      %s87 = sadd.s32 %s86, 1
      %s88 = scalar_select %p85, %s86, %s87
      %p91 = pneg %p85
      %p92 = scmp.eq.s32.totalorder %s12, 1
      %p93 = por %p91, %p92
      %p94 = scmp.ne.s32.totalorder %s86, %s89
      %p95 = scmp.eq.s32.totalorder %s12, 0
      %p96 = por %p94, %p95
      %p97 = scmp.ne.s32.totalorder %s86, %s89
      %p98 = scmp.eq.s32.totalorder %s17, 1
      %p99 = por %p97, %p98
      %p100 = scmp.ne.s32.totalorder %s89, %s90
      %p101 = scmp.eq.s32.totalorder %s17, 0
      %p102 = por %p100, %p101
      %p103 = scmp.ne.s32.totalorder %s89, %s90
      %p104 = scmp.eq.s32.totalorder %s18, 1
      %p105 = por %p103, %p104
      %p107 = scmp.ne.s32.totalorder %s90, %s106
      %p108 = scmp.eq.s32.totalorder %s18, 0
      %p109 = por %p107, %p108
      %p110 = scmp.le.s32.totalorder 1, %s12
      %p111 = scmp.lt.s32.totalorder %s12, 3
      %p112 = pnand %p110, %p111
      %p113 = pneg %p112
      // Predicated region
      $region9: #{tpu_custom_call.1} parent=5 // pred_check
        _
      $region10: #{tpu_custom_call.1} parent=5 // pred_check_branch
        %115 = sbr.rel (%p112) target = $region12
      $region11: #{tpu_custom_call.1} parent=5 // pred_region
        %s116 = ssub.s32 %s12, 1
        // Predicated region
        $region13: #{tpu_custom_call.1} parent=11 // pred_check
          %p117 = pneg %p76
        $region14: #{tpu_custom_call.1} parent=11 // pred_check_branch
          %119 = sbr.rel (%p117) target = $region16
        $region15: #{tpu_custom_call.1} parent=11 // pred_region
          %s120 = smul.u32 7, %s22
          %s122 = ssub.s32 896, 896
          %123 = vsyncadd [#allocation3], %s122
          %s124 = smul.addr %s120, 128
          %s125 = scalar_lea.hbm %s1, %s124
          %s126 = sshll.u32 [#allocation2], 4
          %s127 = int_to_ptr.vmem [resolvable:$true] %s126
          %132 = dma.hbm_to_vmem [thread:$0]  %s125, 896, %s127, [#allocation3], 128, 128, 8
        $region16: #{tpu_custom_call.1} parent=11 // pred_fallthru
          _
      $region12: #{tpu_custom_call.1} parent=5 // pred_fallthru
        _
      %p133 = scmp.lt.s32.totalorder %s12, 2
      // Predicated region
      $region17: #{tpu_custom_call.1} parent=5 // pred_check
        %p134 = pneg %p133
      $region18: #{tpu_custom_call.1} parent=5 // pred_check_branch
        %136 = sbr.rel (%p134) target = $region20
      $region19: #{tpu_custom_call.1} parent=5 // pred_region
        // Predicated region
        $region21: #{tpu_custom_call.1} parent=19 // pred_check
          %p137 = pneg %p44
        $region22: #{tpu_custom_call.1} parent=19 // pred_check_branch
          %139 = sbr.rel (%p137) target = $region24
        $region23: #{tpu_custom_call.1} parent=19 // pred_region
          %p140 = scmp.lt.s32.totalorder %s19, 1
          %s141 = scalar_select %p140, %s19, 1
          %s142 = smul.addr %s141, 8
          %s143 = scalar_lea.vmem %s0, %s142
        $region24: #{tpu_custom_call.1} parent=19 // pred_fallthru
          _
      $region20: #{tpu_custom_call.1} parent=5 // pred_fallthru
        _
      %p144 = scmp.le.s32.totalorder 1, %s12
      %p145 = scmp.lt.s32.totalorder %s12, 3
      %p146 = pnand %p144, %p145
      %p147 = pneg %p146
      // Predicated region
      $region25: #{tpu_custom_call.1} parent=5 // pred_check
        _
      $region26: #{tpu_custom_call.1} parent=5 // pred_check_branch
        %149 = sbr.rel (%p146) target = $region28
      $region27: #{tpu_custom_call.1} parent=5 // pred_region
        %s150 = ssub.s32 %s12, 1
        // Predicated region
        $region29: #{tpu_custom_call.1} parent=27 // pred_check
          %p151 = pneg %p76
        $region30: #{tpu_custom_call.1} parent=27 // pred_check_branch
          %153 = sbr.rel (%p151) target = $region32
        $region31: #{tpu_custom_call.1} parent=27 // pred_region
          %154 = dma.done [#allocation3], 896
        $region32: #{tpu_custom_call.1} parent=27 // pred_fallthru
          _
        %p155 = scmp.lt.s32.totalorder %s21, 1
        %s156 = scalar_select %p155, %s21, 1
        %s157 = smul.addr %s156, 8
        %s158 = scalar_lea.vmem %s0, %s157
        %p159 = pneg %p50
        %p160 = pneg %p47
        %p161 = pneg %p76
        %p162 = pneg %p73
        %p163 = pneg %p102
        %p164 = pneg %p99
        %s165 = sand.u32 %s89, 1
        %s166 = scalar_lea.sflag [#allocation4], %s165
        %s167 = sand.u32 %s89, 1
        %s168 = smul.addr %s167, 8
        %s169 = scalar_lea.vmem [#allocation5], %s168
        %p170 = scmp.lt.s32.totalorder %s21, 1
        %s171 = scalar_select %p170, %s21, 1
        %s172 = smul.addr %s171, 8
        %s173 = scalar_lea.vmem %s0, %s172
        %s174 = smul.u32 7, %s22
        %s175 = smul.u32 %s22, 56
        %v176 = vld [vmem:[#allocation2] sm:$0xff]
        %v177 = vld [vmem:[#allocation2 + $0x8] sm:$0xff]
        %v178 = vld [vmem:[#allocation2 + $0x10] sm:$0xff]
        %v179 = vld [vmem:[#allocation2 + $0x18] sm:$0xff]
        %v180 = vld [vmem:[#allocation2 + $0x20] sm:$0xff]
        %v181 = vld [vmem:[#allocation2 + $0x28] sm:$0xff]
        %v182 = vld [vmem:[#allocation2 + $0x30] sm:$0xff]
        %v183 = vld [vmem:[%s173] sm:$0xff]
        %v184 = vlaneseq
        %v185 = vand.u32 %v184, 127
        %v186 = vstv %s175
        %v187 = vadd.s32 %v186, %v185
        %188 = vset.pattern.permute.xlu0 0
        %189 = vperm.xlu0 %188, %v183
        %v190 = vpop.permute.xlu0 %189
        %vm191 = vcmp.eq.s32.totalorder %v190, %v187
        %v192 = vsel %vm191, 1, 0
        %v193 = vcvt.s32.f32 %v192
        %vm194 = vcmask 457728
        %v196 = vsel %vm194, %v193, 0
        %198 = vmatprep.subr.mxu0 0.0
        %199 = vmatpush1.msra.mxu0 0.0
        %200 = vmatprep.subr.mxu0 0.0
        %201 = vmatpush1.msra.mxu0 0.0
        %202 = vmatprep.subr.mxu0 0.0
        %203 = vmatpush1.msra.mxu0 0.0
        %204 = vmatprep.subr.mxu0 0.0
        %205 = vmatpush1.msra.mxu0 0.0
        %206 = vmatprep.subr.mxu0 0.0
        %207 = vmatpush1.msra.mxu0 0.0
        %208 = vmatprep.subr.mxu0 0.0
        %209 = vmatpush1.msra.mxu0 0.0
        %210 = vmatprep.subr.mxu0 0.0
        %211 = vmatpush1.msra.mxu0 0.0
        %212 = vmatprep.subr.mxu0 0.0
        %213 = vmatpush1.msra.mxu0 0.0
        %214 = vmatprep.subr.mxu0 0.0
        %215 = vmatpush1.msra.mxu0 0.0
        %216 = vmatprep.subr.mxu0 0.0
        %217 = vmatpush1.msra.mxu0 %v182
        %218 = vmatprep.subr.mxu0 0.0
        %219 = vmatpush1.msra.mxu0 %v181
        %220 = vmatprep.subr.mxu0 0.0
        %221 = vmatpush1.msra.mxu0 %v180
        %222 = vmatprep.subr.mxu0 0.0
        %223 = vmatpush1.msra.mxu0 %v179
        %224 = vmatprep.subr.mxu0 0.0
        %225 = vmatpush1.msra.mxu0 %v178
        %226 = vmatprep.subr.mxu0 0.0
        %227 = vmatpush1.msra.mxu0 %v177
        %228 = vmatprep.subr.mxu0 0.0
        %229 = vmatpush1.msra.mxu0 %v176
        %230 = vmatprep.subr.mxu0 0.0
        %231 = vmatpush2.msra.mxu0 0.0
        %232 = vmatprep.subr.mxu0 0.0
        %233 = vmatpush2.msra.mxu0 0.0
        %234 = vmatprep.subr.mxu0 0.0
        %235 = vmatpush2.msra.mxu0 0.0
        %236 = vmatprep.subr.mxu0 0.0
        %237 = vmatpush2.msra.mxu0 0.0
        %238 = vmatprep.subr.mxu0 0.0
        %239 = vmatpush2.msra.mxu0 0.0
        %240 = vmatprep.subr.mxu0 0.0
        %241 = vmatpush2.msra.mxu0 0.0
        %242 = vmatprep.subr.mxu0 0.0
        %243 = vmatpush2.msra.mxu0 0.0
        %244 = vmatprep.subr.mxu0 0.0
        %245 = vmatpush2.msra.mxu0 0.0
        %246 = vmatprep.subr.mxu0 0.0
        %247 = vmatpush2.msra.mxu0 0.0
        %248 = vmatprep.subr.mxu0 0.0
        %249 = vmatpush2.msra.mxu0 0.0
        %250 = vmatprep.subr.mxu0 0.0
        %251 = vmatpush2.msra.mxu0 0.0
        %252 = vmatprep.subr.mxu0 0.0
        %253 = vmatpush2.msra.mxu0 0.0
        %254 = vmatprep.subr.mxu0 0.0
        %255 = vmatpush2.msra.mxu0 0.0
        %256 = vmatprep.subr.mxu0 0.0
        %257 = vmatpush2.msra.mxu0 0.0
        %258 = vmatprep.subr.mxu0 0.0
        %259 = vmatpush2.msra.mxu0 0.0
        %260 = vmatprep.subr.mxu0 0.0
        %261 = vmatpush2.msra.mxu0 0.0
        %262 = vmatprep.mubr.f32.mxu0 0.0
        %263 = vmatmul.mubr.f32.gmra.mxu0 %v196
        %v264 = vpop.f32.mrf.mxu0
        %v265 = vadd.f32 0.0, %v264
        %v266 = vpop.f32.mrf.mxu0
        %267 = vdwg.mxu0
        %268 = vst [vmem:[%s169] sm:$0xff] %v265
        %s269 = sand.u32 %s89, 1
        %s270 = scalar_lea.sflag [#allocation4], %s269
        %s271 = sand.u32 %s89, 1
        %s272 = smul.addr %s271, 8
        %s273 = scalar_lea.vmem [#allocation5], %s272
        // Predicated region
        $region33: #{tpu_custom_call.1} parent=27 // pred_check
          %p274 = pneg %p99
        $region34: #{tpu_custom_call.1} parent=27 // pred_check_branch
          %276 = sbr.rel (%p274) target = $region36
        $region35: #{tpu_custom_call.1} parent=27 // pred_region
          %s278 = ssub.s32 128, 128
          %279 = vsyncadd %s270, %s278
          %s280 = smul.addr %s21, 128
          %s281 = scalar_lea.hbm %s2, %s280
          %s283 = sshll.u32 %s273, 4
          %s284 = int_to_ptr.vmem [resolvable:$true] %s283
          %286 = dma.vmem_to_hbm [thread:$0]  %s284, 128, %s281, %s270
        $region36: #{tpu_custom_call.1} parent=27 // pred_fallthru
          _
      $region28: #{tpu_custom_call.1} parent=5 // pred_fallthru
        _
      %p287 = scmp.le.s32.totalorder 2, %s12
      // Predicated region
      $region37: #{tpu_custom_call.1} parent=5 // pred_check
        %p288 = pneg %p287
      $region38: #{tpu_custom_call.1} parent=5 // pred_check_branch
        %290 = sbr.rel (%p288) target = $region40
      $region39: #{tpu_custom_call.1} parent=5 // pred_region
        %s291 = ssub.s32 %s12, 2
        // Predicated region
        $region41: #{tpu_custom_call.1} parent=39 // pred_check
          %p292 = pneg %p105
        $region42: #{tpu_custom_call.1} parent=39 // pred_check_branch
          %294 = sbr.rel (%p292) target = $region44
        $region43: #{tpu_custom_call.1} parent=39 // pred_region
          %s295 = sand.u32 %s90, 1
          %s296 = scalar_lea.sflag [#allocation4], %s295
          %s297 = sand.u32 %s90, 1
          %s298 = smul.addr %s297, 8
          %s299 = scalar_lea.vmem [#allocation5], %s298
          %300 = dma.done %s296, 128
        $region44: #{tpu_custom_call.1} parent=39 // pred_fallthru
          _
      $region40: #{tpu_custom_call.1} parent=5 // pred_fallthru
        _
    $region6: #{tpu_custom_call.1} parent=1 // loop_footer
      %s16 = sadd.s32 1, %s12
    $region7: #{tpu_custom_call.1} parent=1 // loop_footer_branch
      %11 = sbr.rel target = $region3
    $region8: #{tpu_custom_call.1} parent=1 // loop_exit
      _
    %301 = vsyncpa [#allocation3], 1
    %s302 = scalar_lea.sflag [#allocation3], 1
    %303 = vsyncpa %s302, 1
    %304 = vsyncpa [#allocation4], 1
    %s305 = scalar_lea.sflag [#allocation4], 1
    %306 = vsyncpa %s305, 1

</llo_original>
